<compile_context>
chip_gen: v7x
topology: tpu7x:2x2x1
jax: 0.10.0
libtpu: 0.0.40
codegen_flags: <defaults>
</compile_context>

<pallas_src>
import functools

import jax
import jax.numpy as jnp
from jax import lax
from jax.experimental import pallas as pl
from jax.experimental.pallas import tpu as pltpu


def _layernorm_kernel(x_ref, w_ref, b_ref, o_ref, *, eps, d_valid, pad_cols):
    # x_ref : (BB, Dblk) block of flattened batch rows (input dtype).
    # w_ref : (1, Dblk) gathered scale, already float32 (cast hoisted out).
    # b_ref : (1, Dblk) gathered shift, already float32.
    x = x_ref[...].astype(jnp.float32)
    w = w_ref[...]
    b = b_ref[...]

    inv_d = 1.0 / float(d_valid)
    # Two-pass (mean, then centered sum of squares): numerically robust and
    # cheap since the block is VMEM/vreg resident (kernel is HBM-bound anyway).
    mean = jnp.sum(x, axis=-1, keepdims=True) * inv_d          # (BB, 1)
    xc = x - mean
    sumsq = jnp.sum(xc * xc, axis=-1, keepdims=True)           # (BB, 1)
    if pad_cols:
        # Fallback path only: pad lanes are HBM zeros, each contributing
        # (0 - mean)^2 to sumsq; remove them exactly (no masks needed).
        sumsq = sumsq - float(pad_cols) * mean * mean
    var = sumsq * inv_d                                        # biased variance
    inv = lax.rsqrt(var + eps)

    o_ref[...] = (xc * inv * w + b).astype(o_ref.dtype)


def _choose_batch_block(batch, row_bytes, itemsize):
    # Sublane-packing-aligned batch block: f32 -> 8, bf16 -> 16, int8 -> 32.
    sublane = max(8, 32 // max(1, itemsize))
    # ~4 MiB input blocks amortize the per-grid-step pipeline overhead on
    # v5e/v6e/v7x; with double-buffered in + out blocks plus f32 temporaries
    # this stays well inside the raised 48 MiB VMEM limit.
    target_block_bytes = 4 * 1024 * 1024
    bb = max(1, target_block_bytes // max(1, row_bytes))
    bb = max(sublane, (bb // sublane) * sublane)
    # Never let the grid collapse to one step when the batch is big enough:
    # keep >= ~4 steps so DMA/compute/writeback overlap and both v7x
    # TensorCores get work on the "parallel" axis.
    cap = max(sublane, ((batch // 4) // sublane) * sublane)
    bb = min(bb, cap)
    if bb >= batch:
        bb = batch          # tiny batch: block == full batch dim (allowed)
    return bb


def layer_norm_pallas(x, weight, bias, idx, eps=1e-5):
    """x: (B, C, N, T); weight, bias: (C, N_full, T); idx: (N,) int node ids."""
    B, C, N, T = x.shape
    assert weight.shape[0] == C and weight.shape[2] == T
    assert bias.shape == weight.shape
    assert idx.shape == (N,)

    D = C * N * T
    lane_aligned = (D % 128) == 0

    # Glue: gather the affine params for the selected nodes and hoist the f32
    # cast here (param-sized, one-time) instead of re-casting every grid step.
    w_sel = jnp.take(weight, idx, axis=1).astype(jnp.float32).reshape(1, D)
    b_sel = jnp.take(bias, idx, axis=1).astype(jnp.float32).reshape(1, D)

    x2 = x.reshape(B, D)
    if lane_aligned:
        Dblk, pad_cols = D, 0
    else:
        # Rare fallback: one extra HBM pass to zero-pad the lane dim; the
        # kernel removes the pad's variance contribution analytically.
        Dblk = ((D + 127) // 128) * 128
        pad_cols = Dblk - D
        x2 = jnp.pad(x2, ((0, 0), (0, pad_cols)))
        w_sel = jnp.pad(w_sel, ((0, 0), (0, pad_cols)))
        b_sel = jnp.pad(b_sel, ((0, 0), (0, pad_cols)))

    itemsize = jnp.dtype(x.dtype).itemsize
    BB = _choose_batch_block(B, Dblk * itemsize, itemsize)
    grid = pl.cdiv(B, BB)   # ragged final batch block handled by Pallas

    kernel = functools.partial(
        _layernorm_kernel, eps=eps, d_valid=D, pad_cols=pad_cols)

    out2 = pl.pallas_call(
        kernel,
        out_shape=jax.ShapeDtypeStruct((B, Dblk), x.dtype),
        grid_spec=pltpu.PrefetchScalarGridSpec(
            num_scalar_prefetch=0,
            grid=(grid,),
            in_specs=[
                pl.BlockSpec((BB, Dblk), lambda i: (i, 0)),
                pl.BlockSpec((1, Dblk), lambda i: (0, 0)),
                pl.BlockSpec((1, Dblk), lambda i: (0, 0)),
            ],
            out_specs=pl.BlockSpec((BB, Dblk), lambda i: (i, 0)),
        ),
        compiler_params=pltpu.CompilerParams(
            dimension_semantics=("parallel",),
            vmem_limit_bytes=48 * 1024 * 1024),
    )(x2, w_sel, b_sel)

    if not lane_aligned:
        out2 = out2[:, :D]
    return out2.reshape(B, C, N, T)


def layer_norm_ref(x, weight, bias, idx, eps=1e-5):
    """Plain-JAX reference mirroring F.layer_norm over input.shape[1:]."""
    w_sel = jnp.take(weight, idx, axis=1)
    b_sel = jnp.take(bias, idx, axis=1)
    xf = x.astype(jnp.float32)
    mean = jnp.mean(xf, axis=(1, 2, 3), keepdims=True)
    var = jnp.mean((xf - mean) ** 2, axis=(1, 2, 3), keepdims=True)
    y = (xf - mean) / jnp.sqrt(var + eps)
    return (y * w_sel[None] + b_sel[None]).astype(x.dtype)


if __name__ == "__main__":
    key = jax.random.PRNGKey(0)

    # Small shapes consistent with the module: batch=2, channels=4,
    # full node count=16, selected nodes=8, time length=16.
    B, C, N_FULL, N_SEL, T = 2, 4, 16, 8, 16
    eps = 1e-5

    kx, kw, kb = jax.random.split(key, 3)
    x = jax.random.normal(kx, (B, C, N_SEL, T), dtype=jnp.float32)

    # Module init is ones/zeros; perturb so the affine path (gather + scale +
    # shift) is actually exercised.
    weight = jnp.ones((C, N_FULL, T), dtype=jnp.float32) \
        + 0.1 * jax.random.normal(kw, (C, N_FULL, T), dtype=jnp.float32)
    bias = 0.1 * jax.random.normal(kb, (C, N_FULL, T), dtype=jnp.float32)

    idx = jnp.array([0, 2, 4, 6, 8, 10, 12, 14], dtype=jnp.int32)

    # Lane-aligned path (D = 4*8*16 = 512).
    out = layer_norm_pallas(x, weight, bias, idx, eps=eps)
    out = jax.block_until_ready(out)
    ref = layer_norm_ref(x, weight, bias, idx, eps=eps)
    assert out.shape == x.shape and out.dtype == x.dtype
    assert jnp.allclose(out, ref, atol=1e-5, rtol=1e-5), "mismatch (aligned)"

    # Fallback path (D = 4*8*10 = 320, not a multiple of 128).
    T2 = 10
    x2 = jax.random.normal(kx, (B, C, N_SEL, T2), dtype=jnp.float32)
    w2 = jnp.ones((C, N_FULL, T2), dtype=jnp.float32) \
        + 0.1 * jax.random.normal(kw, (C, N_FULL, T2), dtype=jnp.float32)
    b2 = 0.1 * jax.random.normal(kb, (C, N_FULL, T2), dtype=jnp.float32)
    out2 = jax.block_until_ready(layer_norm_pallas(x2, w2, b2, idx, eps=eps))
    ref2 = layer_norm_ref(x2, w2, b2, idx, eps=eps)
    assert jnp.allclose(out2, ref2, atol=1e-5, rtol=1e-5), "mismatch (padded)"

    print("KERNEL_OK")
</pallas_src>

<mosaic_0001>
module attributes {stable_mosaic.version = 11 : i64} {
  func.func @_layernorm_kernel(%arg0: i32, %arg1: memref<2x512xf32, #tpu.memory_space<vmem>>, %arg2: memref<1x512xf32, #tpu.memory_space<vmem>>, %arg3: memref<1x512xf32, #tpu.memory_space<vmem>>, %arg4: memref<2x512xf32, #tpu.memory_space<vmem>>) attributes {dimension_semantics = [#tpu.dimension_semantics<parallel>], iteration_bounds = array<i64: 1>, scalar_prefetch = 0 : i64, scratch_operands = 0 : i64, tpu.core_type = #tpu.core_type<tc>, window_params = [{transform_indices = @transform_0, window_bounds = array<i64: 2, 512>}, {pipeline_mode = #tpu.pipeline_mode<synchronous>, transform_indices = @transform_1, window_bounds = array<i64: 1, 512>}, {pipeline_mode = #tpu.pipeline_mode<synchronous>, transform_indices = @transform_2, window_bounds = array<i64: 1, 512>}, {transform_indices = @transform_3, window_bounds = array<i64: 2, 512>}]} {
    %c0 = arith.constant 0 : index
    %c0_0 = arith.constant 0 : index
    %0 = vector.load %arg1[%c0, %c0_0] : memref<2x512xf32, #tpu.memory_space<vmem>>, vector<2x512xf32>
    %c0_1 = arith.constant 0 : index
    %c0_2 = arith.constant 0 : index
    %1 = vector.load %arg2[%c0_1, %c0_2] : memref<1x512xf32, #tpu.memory_space<vmem>>, vector<1x512xf32>
    %c0_3 = arith.constant 0 : index
    %c0_4 = arith.constant 0 : index
    %2 = vector.load %arg3[%c0_3, %c0_4] : memref<1x512xf32, #tpu.memory_space<vmem>>, vector<1x512xf32>
    %cst = arith.constant dense<0.000000e+00> : vector<2xf32>
    %3 = vector.multi_reduction <add>, %0, %cst [1] : vector<2x512xf32> to vector<2xf32>
    %4 = vector.shape_cast %3 : vector<2xf32> to vector<2x1xf32>
    %cst_5 = arith.constant 0.001953125 : f32
    %5 = vector.broadcast %cst_5 : f32 to vector<2x1xf32>
    %6 = arith.mulf %4, %5 : vector<2x1xf32>
    %7 = vector.broadcast %6 : vector<2x1xf32> to vector<2x512xf32>
    %8 = arith.subf %0, %7 : vector<2x512xf32>
    %9 = arith.mulf %8, %8 : vector<2x512xf32>
    %cst_6 = arith.constant dense<0.000000e+00> : vector<2xf32>
    %10 = vector.multi_reduction <add>, %9, %cst_6 [1] : vector<2x512xf32> to vector<2xf32>
    %11 = vector.shape_cast %10 : vector<2xf32> to vector<2x1xf32>
    %cst_7 = arith.constant 0.001953125 : f32
    %12 = vector.broadcast %cst_7 : f32 to vector<2x1xf32>
    %13 = arith.mulf %11, %12 : vector<2x1xf32>
    %cst_8 = arith.constant 9.99999974E-6 : f32
    %14 = vector.broadcast %cst_8 : f32 to vector<2x1xf32>
    %15 = arith.addf %13, %14 : vector<2x1xf32>
    %16 = math.rsqrt %15 : vector<2x1xf32>
    %17 = vector.broadcast %16 : vector<2x1xf32> to vector<2x512xf32>
    %18 = arith.mulf %8, %17 : vector<2x512xf32>
    %19 = vector.broadcast %1 : vector<1x512xf32> to vector<2x512xf32>
    %20 = arith.mulf %18, %19 : vector<2x512xf32>
    %21 = vector.broadcast %2 : vector<1x512xf32> to vector<2x512xf32>
    %22 = arith.addf %20, %21 : vector<2x512xf32>
    %c0_9 = arith.constant 0 : index
    %c0_10 = arith.constant 0 : index
    %23 = vector.load %arg4[%c0_9, %c0_10] : memref<2x512xf32, #tpu.memory_space<vmem>>, vector<2x512xf32>
    tpu.vector_store %arg4[%c0_9, %c0_10], %22 {strides = array<i32>} : memref<2x512xf32, #tpu.memory_space<vmem>>, vector<2x512xf32>,
    return
  }
  func.func @transform_0(%arg0: i32) -> (i32, i32) {
    %c0_i32 = arith.constant 0 : i32
    %c0_i32_0 = arith.constant 0 : i32
    return %arg0, %c0_i32 : i32, i32
  }
  func.func @transform_1(%arg0: i32) -> (i32, i32) {
    %c0_i32 = arith.constant 0 : i32
    %c0_i32_0 = arith.constant 0 : i32
    %c0_i32_1 = arith.constant 0 : i32
    return %c0_i32, %c0_i32_0 : i32, i32
  }
  func.func @transform_2(%arg0: i32) -> (i32, i32) {
    %c0_i32 = arith.constant 0 : i32
    %c0_i32_0 = arith.constant 0 : i32
    %c0_i32_1 = arith.constant 0 : i32
    return %c0_i32, %c0_i32_0 : i32, i32
  }
  func.func @transform_3(%arg0: i32) -> (i32, i32) {
    %c0_i32 = arith.constant 0 : i32
    %c0_i32_0 = arith.constant 0 : i32
    return %arg0, %c0_i32 : i32, i32
  }
}

</mosaic_0001>

<llo_original>
// kernel: tpu_custom_call.1
$region0: #{tpu_custom_call.1}
  #allocation0 [shape = 'u32[]', space=smem, size = 0x4, offset = 0x4, fixed_abs, tag = 'smem constant byte address 0x4 - core index']
  #allocation1 [shape = 'u32[144,128]{1,0:T(1,128)}', space=vmem, size = 0x12000, scoped, tag = 'internal scratch']
  %s0 = inlined_call_operand.hbm [shape: f32[2,512], index: 0, kind: input, shape index: {}]
  %s1 = inlined_call_operand.hbm [shape: f32[1,512], index: 1, kind: input, shape index: {}]
  %s2 = inlined_call_operand.vmem [shape: f32[1,512], index: 2, kind: input, shape index: {}]
  %s3 = inlined_call_operand.hbm [shape: f32[2,512], index: 3, kind: output, shape index: {}]
  %s4 = sld [smem:[#allocation0]]
  $region30: #{tpu_custom_call.1} parent=0
    _
  %s6 = ssub.s32 1, %s4
  %s7 = scalar_select 0, %s6, %s4
  $region1: #{tpu_custom_call.1} parent=0
    #allocation2 [shape = 'u8[4096]{0}', space=vmem, size = 0x1000, scoped, tag = 'input window, operand 0, single buffered']
    #allocation3 [shape = 's32[1]{0}', space=sflag, size = 0x4, scoped, tag = 'scoped memory for tpu_custom_call.1']
    #allocation4 [shape = 's32[1]{0}', space=sflag, size = 0x4, scoped, tag = 'scoped memory for tpu_custom_call.1']
    #allocation5 [shape = 'u8[2048]{0}', space=vmem, size = 0x800, scoped, tag = 'input window, operand 1, single buffered']
    #allocation6 [shape = 's32[1]{0}', space=sflag, size = 0x4, scoped, tag = 'scoped memory for tpu_custom_call.1']
    #allocation7 [shape = 'u8[4096]{0}', space=vmem, size = 0x1000, scoped, tag = 'output window, operand 0, single buffered']
    %8 = vsyncpa [#allocation3], 0
    %9 = vsyncpa [#allocation6], 0
    %10 = vsyncpa [#allocation4], 0
    // Predicated region
    $region2: #{tpu_custom_call.1} parent=1 // pred_check
      _
    $region3: #{tpu_custom_call.1} parent=1 // pred_check_branch
      %12 = sbr.rel (0) target = $region5
    $region4: #{tpu_custom_call.1} parent=1 // pred_region
      %s14 = ssub.s32 128, 128
      %15 = vsyncadd [#allocation3], %s14
      %s17 = sshll.u32 [#allocation2], 4
      %s18 = int_to_ptr.vmem [resolvable:$true] %s17
      %20 = dma.hbm_to_vmem [thread:$0]  %s0, 128, %s18, [#allocation3]
    $region5: #{tpu_custom_call.1} parent=1 // pred_fallthru
      _
    // Predicated region
    $region6: #{tpu_custom_call.1} parent=1 // pred_check
      _
    $region7: #{tpu_custom_call.1} parent=1 // pred_check_branch
      %22 = sbr.rel (0) target = $region9
    $region8: #{tpu_custom_call.1} parent=1 // pred_region
      %s24 = ssub.s32 64, 64
      %25 = vsyncadd [#allocation6], %s24
      %s27 = sshll.u32 [#allocation5], 4
      %s28 = int_to_ptr.vmem [resolvable:$true] %s27
      %30 = dma.hbm_to_vmem [thread:$0]  %s1, 64, %s28, [#allocation6]
    $region9: #{tpu_custom_call.1} parent=1 // pred_fallthru
      _
    // Predicated region
    $region10: #{tpu_custom_call.1} parent=1 // pred_check
      _
    $region11: #{tpu_custom_call.1} parent=1 // pred_check_branch
      %32 = sbr.rel (0) target = $region13
    $region12: #{tpu_custom_call.1} parent=1 // pred_region
      _
    $region13: #{tpu_custom_call.1} parent=1 // pred_fallthru
      _
    // Predicated region
    $region14: #{tpu_custom_call.1} parent=1 // pred_check
      _
    $region15: #{tpu_custom_call.1} parent=1 // pred_check_branch
      %34 = sbr.rel (0) target = $region17
    $region16: #{tpu_custom_call.1} parent=1 // pred_region
      %35 = dma.done [#allocation3], 128
    $region17: #{tpu_custom_call.1} parent=1 // pred_fallthru
      _
    // Predicated region
    $region18: #{tpu_custom_call.1} parent=1 // pred_check
      _
    $region19: #{tpu_custom_call.1} parent=1 // pred_check_branch
      %37 = sbr.rel (0) target = $region21
    $region20: #{tpu_custom_call.1} parent=1 // pred_region
      %38 = dma.done [#allocation6], 64
    $region21: #{tpu_custom_call.1} parent=1 // pred_fallthru
      _
    %v39 = vld [vmem:[#allocation2] sm:$0xff]
    %v40 = vld [vmem:[#allocation5] sm:$0xf]
    %v41 = vld [vmem:[%s2] sm:$0xf]
    %v43 = vcombine.high %v39, %v39
    %v45 = vunpack.c.l.s4 1983009808
    %v46 = vunpack.c.0.s8 %v45
    %v47 = vlaneseq
    %v48 = vshrl.u32 %v47, 7
    %v49 = vsub.s32 %v46, %v48
    %v50 = vrot.slane %v39, %v49
    %v52 = vunpack.c.l.s4 1983009808
    %v53 = vunpack.c.0.s8 %v52
    %v54 = vlaneseq
    %v55 = vshrl.u32 %v54, 7
    %v56 = vsub.s32 %v53, %v55
    %v57 = vrot.slane %v43, %v56
    %v58 = vcombine.high %v50, %v50
    %v59 = vcombine.high %v57, %v57
    %vm64 = vcmask 1041408
    %v65 = vsel %vm64, %v50, 0.0
    %v66 = vsel %vm64, %v58, 0.0
    %v67 = vadd.f32 %v65, %v66
    %v68 = vsel %vm64, %v57, 0.0
    %v69 = vadd.f32 %v67, %v68
    %v70 = vsel %vm64, %v59, 0.0
    %v71 = vadd.f32 %v69, %v70
    %72 = vadd.xlane.f32.xlu0 %v71
    %v73 = vpop.xlane.xlu0 %72
    %v74 = vmul.f32 %v73, 0.001953125
    %v77 = vunpack.c.l.s4 269488144
    %v78 = vunpack.c.0.s8 %v77
    %v79 = vlaneseq
    %v80 = vshrl.u32 %v79, 7
    %v81 = vsub.s32 %v78, %v80
    %v82 = vrot.slane %v74, %v81
    %v84 = vsub.f32 %v39, %v82
    %v85 = vmul.f32 %v84, %v84
    %v87 = vcombine.high %v85, %v85
    %v89 = vunpack.c.l.s4 1983009808
    %v90 = vunpack.c.0.s8 %v89
    %v91 = vlaneseq
    %v92 = vshrl.u32 %v91, 7
    %v93 = vsub.s32 %v90, %v92
    %v94 = vrot.slane %v85, %v93
    %v96 = vunpack.c.l.s4 1983009808
    %v97 = vunpack.c.0.s8 %v96
    %v98 = vlaneseq
    %v99 = vshrl.u32 %v98, 7
    %v100 = vsub.s32 %v97, %v99
    %v101 = vrot.slane %v87, %v100
    %v102 = vcombine.high %v94, %v94
    %v103 = vcombine.high %v101, %v101
    %v108 = vsel %vm64, %v94, 0.0
    %v109 = vsel %vm64, %v102, 0.0
    %v110 = vadd.f32 %v108, %v109
    %v111 = vsel %vm64, %v101, 0.0
    %v112 = vadd.f32 %v110, %v111
    %v113 = vsel %vm64, %v103, 0.0
    %v114 = vadd.f32 %v112, %v113
    %115 = vadd.xlane.f32.xlu0 %v114
    %v116 = vpop.xlane.xlu0 %115
    %v117 = vmul.f32 %v116, 0.001953125
    %v118 = vadd.f32 %v117, 1e-05
    %v119 = vrsqrt.pop %v118
    %v122 = vunpack.c.l.s4 269488144
    %v123 = vunpack.c.0.s8 %v122
    %v124 = vlaneseq
    %v125 = vshrl.u32 %v124, 7
    %v126 = vsub.s32 %v123, %v125
    %v127 = vrot.slane %v119, %v126
    %v129 = vmul.f32 %v84, %v127
    %v131 = vlaneseq
    %v132 = vshrl.u32 %v131, 7
    %v133 = vsub.s32 0, %v132
    %v134 = vrot.slane %v40, %v133
    %v135 = vlaneseq
    %v136 = vshrl.u32 %v135, 7
    %v137 = vsub.s32 1, %v136
    %v138 = vrot.slane %v40, %v137
    %v139 = vlaneseq
    %v140 = vshrl.u32 %v139, 7
    %v141 = vsub.s32 2, %v140
    %v142 = vrot.slane %v40, %v141
    %v143 = vlaneseq
    %v144 = vshrl.u32 %v143, 7
    %v145 = vsub.s32 3, %v144
    %v146 = vrot.slane %v40, %v145
    %v147 = vcombine.low %v134, %v138
    %v148 = vcombine.low %v142, %v146
    %v150 = vunpack.c.l.s4 1983009808
    %v151 = vunpack.c.0.s8 %v150
    %v152 = vlaneseq
    %v153 = vshrl.u32 %v152, 7
    %v154 = vsub.s32 %v151, %v153
    %v155 = vrot.slane %v147, %v154
    %v157 = vunpack.c.l.s4 1983009808
    %v158 = vunpack.c.0.s8 %v157
    %v159 = vlaneseq
    %v160 = vshrl.u32 %v159, 7
    %v161 = vsub.s32 %v158, %v160
    %v162 = vrot.slane %v148, %v161
    %v163 = vcombine.low %v155, %v162
    %v165 = vmul.f32 %v129, %v163
    %v167 = vlaneseq
    %v168 = vshrl.u32 %v167, 7
    %v169 = vsub.s32 0, %v168
    %v170 = vrot.slane %v41, %v169
    %v171 = vlaneseq
    %v172 = vshrl.u32 %v171, 7
    %v173 = vsub.s32 1, %v172
    %v174 = vrot.slane %v41, %v173
    %v175 = vlaneseq
    %v176 = vshrl.u32 %v175, 7
    %v177 = vsub.s32 2, %v176
    %v178 = vrot.slane %v41, %v177
    %v179 = vlaneseq
    %v180 = vshrl.u32 %v179, 7
    %v181 = vsub.s32 3, %v180
    %v182 = vrot.slane %v41, %v181
    %v183 = vcombine.low %v170, %v174
    %v184 = vcombine.low %v178, %v182
    %v186 = vunpack.c.l.s4 1983009808
    %v187 = vunpack.c.0.s8 %v186
    %v188 = vlaneseq
    %v189 = vshrl.u32 %v188, 7
    %v190 = vsub.s32 %v187, %v189
    %v191 = vrot.slane %v183, %v190
    %v193 = vunpack.c.l.s4 1983009808
    %v194 = vunpack.c.0.s8 %v193
    %v195 = vlaneseq
    %v196 = vshrl.u32 %v195, 7
    %v197 = vsub.s32 %v194, %v196
    %v198 = vrot.slane %v184, %v197
    %v199 = vcombine.low %v191, %v198
    %v201 = vadd.f32 %v165, %v199
    %202 = vst [vmem:[#allocation7] sm:$0xff] %v201
    // Predicated region
    $region22: #{tpu_custom_call.1} parent=1 // pred_check
      _
    $region23: #{tpu_custom_call.1} parent=1 // pred_check_branch
      %204 = sbr.rel (0) target = $region25
    $region24: #{tpu_custom_call.1} parent=1 // pred_region
      %s206 = ssub.s32 128, 128
      %207 = vsyncadd [#allocation4], %s206
      %s209 = sshll.u32 [#allocation7], 4
      %s210 = int_to_ptr.vmem [resolvable:$true] %s209
      %212 = dma.vmem_to_hbm [thread:$0]  %s210, 128, %s3, [#allocation4]
    $region25: #{tpu_custom_call.1} parent=1 // pred_fallthru
      _
    // Predicated region
    $region26: #{tpu_custom_call.1} parent=1 // pred_check
      _
    $region27: #{tpu_custom_call.1} parent=1 // pred_check_branch
      %214 = sbr.rel (0) target = $region29
    $region28: #{tpu_custom_call.1} parent=1 // pred_region
      %215 = dma.done [#allocation4], 128
    $region29: #{tpu_custom_call.1} parent=1 // pred_fallthru
      _
    %216 = vsyncpa [#allocation3], 1
    %217 = vsyncpa [#allocation6], 1
    %218 = vsyncpa [#allocation4], 1

</llo_original>
